<compile_context>
chip_gen: v7x
topology: tpu7x:2x2x1
jax: 0.10.0
libtpu: 0.0.40
codegen_flags: <defaults>
</compile_context>

<pallas_src>
import functools

import jax
import jax.numpy as jnp
from jax import lax
from jax.experimental import pallas as pl
from jax.experimental.pallas import tpu as pltpu


def _round_up(a, b):
    return ((a + b - 1) // b) * b


def _vmem_capacity_bytes():
    """Physical VMEM of the current generation; conservative fallback."""
    try:
        info = pltpu.get_tpu_info()
        cap = int(getattr(info, "vmem_capacity_bytes", 0) or 0)
        if cap > 0:
            return cap
    except Exception:
        pass
    return 64 * 1024 * 1024  # v7x per-TensorCore VMEM (safe lower bound)


# ---------------------------------------------------------------------------
# Fully fused kernel: whole (N, D) array resident in VMEM, single grid step.
# One HBM read + one HBM write.
# ---------------------------------------------------------------------------
def _pair_norm_fused_kernel(x_ref, o_ref, *, mode, scale):
    x = x_ref[...].astype(jnp.float32)
    n = x.shape[0]
    mu = jnp.mean(x, axis=0, keepdims=True)                  # (1, D) column mean
    if mode == 'PN':
        c = x - mu
        msq = jnp.sum(c * c) * (1.0 / n)                     # mean row ||x-mu||^2
        inv = scale * lax.rsqrt(1e-6 + msq)                  # EUP rsqrt, not div
        o_ref[...] = (c * inv).astype(o_ref.dtype)
    elif mode == 'PN-SI':
        c = x - mu
        inv = lax.rsqrt(1e-6 + jnp.sum(c * c, axis=1, keepdims=True))
        o_ref[...] = (scale * c * inv).astype(o_ref.dtype)
    else:  # 'PN-SCS'
        inv = lax.rsqrt(1e-6 + jnp.sum(x * x, axis=1, keepdims=True))
        o_ref[...] = (scale * x * inv - mu).astype(o_ref.dtype)


# ---------------------------------------------------------------------------
# Tiled stats, PN-SI / PN-SCS: per-tile column-sum partials (8, D), row-masked.
# Stateless -> "parallel" grid -> both TensorCores on v7x.
# ---------------------------------------------------------------------------
def _colsum_tiles_kernel(x_ref, sums_ref, *, n_rows):
    t = pl.program_id(0)
    x = x_ref[...].astype(jnp.float32)
    tn, d = x.shape
    row = lax.broadcasted_iota(jnp.int32, (tn, d), 0) + t * tn
    x = jnp.where(row < n_rows, x, 0.0)                      # mask ragged last tile
    sums_ref[...] = jnp.sum(x.reshape(tn // 8, 8, d), axis=0)[None]


# ---------------------------------------------------------------------------
# Tiled stats, PN: per-tile column-sum partials + per-tile *centered*
# sum-of-squares (robust to catastrophic cancellation; combined across tiles
# in JAX with the standard pairwise-variance formula).
# ---------------------------------------------------------------------------
def _pn_stats_tiles_kernel(x_ref, sums_ref, css_ref, *, n_rows):
    t = pl.program_id(0)
    x = x_ref[...].astype(jnp.float32)
    tn, d = x.shape
    row = lax.broadcasted_iota(jnp.int32, (tn, d), 0) + t * tn
    valid = row < n_rows
    x = jnp.where(valid, x, 0.0)
    psum = jnp.sum(x.reshape(tn // 8, 8, d), axis=0)         # (8, D) vreg-shaped
    sums_ref[...] = psum[None]
    count = jnp.minimum(tn, n_rows - t * tn).astype(jnp.float32)
    mean_t = jnp.sum(psum, axis=0, keepdims=True) / count    # (1, D) tile mean
    c = jnp.where(valid, x - mean_t, 0.0)
    css = jnp.sum(c * c)                                     # tile-centered SSQ
    css_ref[...] = jnp.broadcast_to(css, css_ref.shape)


# ---------------------------------------------------------------------------
# Tiled apply kernels (streaming, parallel; OOB rows of a partial last block
# produce garbage that is dropped on write).
# ---------------------------------------------------------------------------
def _apply_pn_kernel(x_ref, mu_ref, inv_ref, o_ref):
    inv = inv_ref[0, 0]                                      # scalar from SMEM
    x = x_ref[...].astype(jnp.float32)
    o_ref[...] = ((x - mu_ref[...]) * inv).astype(o_ref.dtype)


def _apply_si_scs_kernel(x_ref, mu_ref, o_ref, *, mode, scale):
    x = x_ref[...].astype(jnp.float32)
    mu = mu_ref[...]
    if mode == 'PN-SI':
        c = x - mu
        inv = lax.rsqrt(1e-6 + jnp.sum(c * c, axis=1, keepdims=True))
        o_ref[...] = (scale * c * inv).astype(o_ref.dtype)
    else:  # 'PN-SCS'
        inv = lax.rsqrt(1e-6 + jnp.sum(x * x, axis=1, keepdims=True))
        o_ref[...] = (scale * x * inv - mu).astype(o_ref.dtype)


# ---------------------------------------------------------------------------
# Wrapper
# ---------------------------------------------------------------------------
def pair_norm(x, mode='PN-SCS', scale=1.0, tn=None,
              fused_bytes_limit=16 * 1024 * 1024, donate_x=False):
    assert mode in ['None', 'PN', 'PN-SI', 'PN-SCS']
    assert x.ndim == 2
    if mode == 'None':
        return x

    n, d = x.shape
    itemsize = jnp.dtype(x.dtype).itemsize
    cap = _vmem_capacity_bytes()

    x_io_bytes = n * d * itemsize
    x_f32_bytes = n * d * 4

    # ---- fully fused path: whole x resident in VMEM (2 HBM passes) --------
    fused_working = 2 * x_io_bytes + 2 * x_f32_bytes        # in/out + f32 temps
    if (tn is None
            and x_f32_bytes <= fused_bytes_limit
            and fused_working + (4 << 20) <= int(0.70 * cap)):
        vmem = min(max(fused_working + (4 << 20), 16 << 20), int(0.90 * cap))
        return pl.pallas_call(
            functools.partial(_pair_norm_fused_kernel, mode=mode, scale=scale),
            out_shape=jax.ShapeDtypeStruct((n, d), x.dtype),
            in_specs=[pl.BlockSpec((n, d), lambda: (0, 0))],
            out_specs=pl.BlockSpec((n, d), lambda: (0, 0)),
            compiler_params=pltpu.CompilerParams(vmem_limit_bytes=vmem),
        )(x)

    # ---- tiled streaming path (no pad / no slice; ragged rows masked) -----
    sub = max(8, 32 // max(1, itemsize))          # 8 f32 / 16 bf16 / 32 int8
    if tn is None:
        tn = max(sub, ((4 << 20) // (4 * d)) // sub * sub)   # ~4 MiB f32 tile
    else:
        tn = max(sub, (tn // sub) * sub)
    tn = min(tn, _round_up(n, sub))
    T = pl.cdiv(n, tn)
    grid = (T,)

    tile_io = tn * d * itemsize
    tile_f32 = tn * d * 4
    vmem = 4 * tile_io + 3 * tile_f32 + (2 << 20)            # dbuf in/out + temps
    vmem = min(max(vmem, 16 << 20), int(0.75 * cap))

    x_spec = pl.BlockSpec((tn, d), lambda t: (t, 0))
    cp_par = pltpu.CompilerParams(dimension_semantics=("parallel",),
                                  vmem_limit_bytes=vmem)
    io_alias = {0: 0} if donate_x else {}

    if mode == 'PN':
        sums_p, css_p = pl.pallas_call(
            functools.partial(_pn_stats_tiles_kernel, n_rows=n),
            out_shape=(jax.ShapeDtypeStruct((T, 8, d), jnp.float32),
                       jax.ShapeDtypeStruct((T, 8, 128), jnp.float32)),
            grid=grid,
            in_specs=[x_spec],
            out_specs=(pl.BlockSpec((1, 8, d), lambda t: (t, 0, 0)),
                       pl.BlockSpec((1, 8, 128), lambda t: (t, 0, 0))),
            compiler_params=cp_par,
        )(x)

        # KB-scale cross-tile combine in plain JAX (robust pairwise variance).
        counts = jnp.minimum(tn, n - jnp.arange(T) * tn).astype(jnp.float32)
        tile_sums = jnp.sum(sums_p, axis=1)                      # (T, D)
        mu = jnp.sum(tile_sums, axis=0, keepdims=True) / n        # (1, D)
        tile_means = tile_sums / counts[:, None]
        css_within = jnp.sum(css_p[:, 0, 0])
        css_between = jnp.sum(counts * jnp.sum((tile_means - mu) ** 2, axis=1))
        inv = scale * lax.rsqrt(1e-6 + (css_within + css_between) / n)
        inv = jnp.reshape(inv, (1, 1)).astype(jnp.float32)

        return pl.pallas_call(
            _apply_pn_kernel,
            out_shape=jax.ShapeDtypeStruct((n, d), x.dtype),
            grid=grid,
            in_specs=[x_spec,
                      pl.BlockSpec((1, d), lambda t: (0, 0)),
                      pl.BlockSpec(memory_space=pltpu.MemorySpace.SMEM)],
            out_specs=pl.BlockSpec((tn, d), lambda t: (t, 0)),
            compiler_params=cp_par,
            input_output_aliases=io_alias,
        )(x, mu.astype(jnp.float32), inv)

    # 'PN-SI' / 'PN-SCS'
    sums_p = pl.pallas_call(
        functools.partial(_colsum_tiles_kernel, n_rows=n),
        out_shape=jax.ShapeDtypeStruct((T, 8, d), jnp.float32),
        grid=grid,
        in_specs=[x_spec],
        out_specs=pl.BlockSpec((1, 8, d), lambda t: (t, 0, 0)),
        compiler_params=cp_par,
    )(x)
    mu = (jnp.sum(sums_p, axis=(0, 1))[None, :] / n).astype(jnp.float32)  # (1, D)

    return pl.pallas_call(
        functools.partial(_apply_si_scs_kernel, mode=mode, scale=scale),
        out_shape=jax.ShapeDtypeStruct((n, d), x.dtype),
        grid=grid,
        in_specs=[x_spec, pl.BlockSpec((1, d), lambda t: (0, 0))],
        out_specs=pl.BlockSpec((tn, d), lambda t: (t, 0)),
        compiler_params=cp_par,
        input_output_aliases=io_alias,
    )(x, mu)


# ---------------------------------------------------------------------------
# Pure-JAX reference (mirrors the PyTorch forward)
# ---------------------------------------------------------------------------
def pair_norm_ref(x, mode='PN-SCS', scale=1.0):
    if mode == 'None':
        return x
    col_mean = x.mean(axis=0)
    if mode == 'PN':
        xc = x - col_mean
        rownorm_mean = jnp.sqrt(1e-6 + (xc ** 2).sum(axis=1).mean())
        return scale * xc / rownorm_mean
    if mode == 'PN-SI':
        xc = x - col_mean
        r = jnp.sqrt(1e-6 + (xc ** 2).sum(axis=1, keepdims=True))
        return scale * xc / r
    # PN-SCS
    r = jnp.sqrt(1e-6 + (x ** 2).sum(axis=1, keepdims=True))
    return scale * x / r - col_mean


if __name__ == "__main__":
    # Small graph: 64 nodes, 32 feature channels -> fully fused VMEM path.
    key = jax.random.PRNGKey(0)
    x = jax.random.normal(key, (64, 32), dtype=jnp.float32)
    for mode in ['None', 'PN', 'PN-SI', 'PN-SCS']:
        out = jax.block_until_ready(pair_norm(x, mode=mode, scale=1.0))
        ref = pair_norm_ref(x, mode=mode, scale=1.0)
        if not jnp.allclose(out, ref, atol=1e-5, rtol=1e-5):
            raise AssertionError(f"fused path mismatch for mode={mode}")

    # Tiled path: ragged N (200 not a multiple of tn=64), D=48 (not a multiple
    # of 128) -> full-dim blocks + masked ragged rows, no pad/slice.
    x2 = jax.random.normal(jax.random.PRNGKey(1), (200, 48), dtype=jnp.float32)
    for mode in ['PN', 'PN-SI', 'PN-SCS']:
        out = jax.block_until_ready(
            pair_norm(x2, mode=mode, scale=0.7, tn=64, fused_bytes_limit=0))
        ref = pair_norm_ref(x2, mode=mode, scale=0.7)
        if not jnp.allclose(out, ref, atol=1e-5, rtol=1e-5):
            raise AssertionError(f"tiled path mismatch for mode={mode}")

    # Tiled path, lane-dense D (multiple of 128), several grid steps.
    x3 = jax.random.normal(jax.random.PRNGKey(2), (96, 128), dtype=jnp.float32)
    for mode in ['PN', 'PN-SI', 'PN-SCS']:
        out = jax.block_until_ready(
            pair_norm(x3, mode=mode, scale=1.3, tn=32, fused_bytes_limit=0))
        ref = pair_norm_ref(x3, mode=mode, scale=1.3)
        if not jnp.allclose(out, ref, atol=1e-5, rtol=1e-5):
            raise AssertionError(f"tiled lane-dense mismatch for mode={mode}")

    # PN with a large column offset: exercises the cancellation-robust
    # per-tile-centered statistics combine on the tiled path.
    x4 = x2 + 100.0
    out = jax.block_until_ready(
        pair_norm(x4, mode='PN', scale=1.0, tn=64, fused_bytes_limit=0))
    ref = pair_norm_ref(x4, mode='PN', scale=1.0)
    if not jnp.allclose(out, ref, atol=1e-4, rtol=1e-4):
        raise AssertionError("tiled PN offset mismatch")

    print("KERNEL_OK")
</pallas_src>

<mosaic_0001>
module attributes {stable_mosaic.version = 11 : i64} {
  func.func @_pair_norm_fused_kernel(%arg0: memref<64x32xf32, #tpu.memory_space<vmem>>, %arg1: memref<64x32xf32, #tpu.memory_space<vmem>>) attributes {dimension_semantics = [], scalar_prefetch = 0 : i64, scratch_operands = 0 : i64, tpu.core_type = #tpu.core_type<tc>} {
    %c0 = arith.constant 0 : index
    %c0_0 = arith.constant 0 : index
    %0 = vector.load %arg0[%c0, %c0_0] : memref<64x32xf32, #tpu.memory_space<vmem>>, vector<64x32xf32>
    %cst = arith.constant dense<0.000000e+00> : vector<32xf32>
    %1 = vector.multi_reduction <add>, %0, %cst [0] : vector<64x32xf32> to vector<32xf32>
    %2 = vector.shape_cast %1 : vector<32xf32> to vector<1x32xf32>
    %cst_1 = arith.constant 6.400000e+01 : f32
    %3 = vector.broadcast %cst_1 : f32 to vector<1x32xf32>
    %4 = arith.divf %2, %3 : vector<1x32xf32>
    %5 = vector.broadcast %4 : vector<1x32xf32> to vector<64x32xf32>
    %6 = arith.subf %0, %5 : vector<64x32xf32>
    %7 = arith.mulf %6, %6 : vector<64x32xf32>
    %8 = vector.shape_cast %7 : vector<64x32xf32> to vector<1x64x32xf32>
    %cst_2 = arith.constant dense<0.000000e+00> : vector<1xf32>
    %9 = vector.multi_reduction <add>, %8, %cst_2 [1, 2] : vector<1x64x32xf32> to vector<1xf32>
    %10 = vector.shape_cast %9 : vector<1xf32> to vector<1x1x1xf32>
    %11 = vector.extract %10[0, 0, 0] : f32 from vector<1x1x1xf32>
    %cst_3 = arith.constant 1.562500e-02 : f32
    %12 = arith.mulf %11, %cst_3 : f32
    %cst_4 = arith.constant 9.99999997E-7 : f32
    %13 = arith.addf %cst_4, %12 : f32
    %14 = math.rsqrt %13 : f32
    %cst_5 = arith.constant 1.000000e+00 : f32
    %15 = arith.mulf %cst_5, %14 : f32
    %16 = vector.broadcast %15 : f32 to vector<64x32xf32>
    %17 = arith.mulf %6, %16 : vector<64x32xf32>
    %c0_6 = arith.constant 0 : index
    %c0_7 = arith.constant 0 : index
    %18 = vector.load %arg1[%c0_6, %c0_7] : memref<64x32xf32, #tpu.memory_space<vmem>>, vector<64x32xf32>
    tpu.vector_store %arg1[%c0_6, %c0_7], %17 {strides = array<i32>} : memref<64x32xf32, #tpu.memory_space<vmem>>, vector<64x32xf32>,
    return
  }
}

</mosaic_0001>

<llo_original>
// kernel: tpu_custom_call.1
$region0: #{tpu_custom_call.1}
  #allocation0 [shape = 'u32[]', space=smem, size = 0x4, offset = 0x4, fixed_abs, tag = 'smem constant byte address 0x4 - core index']
  #allocation1 [shape = 'u32[144,128]{1,0:T(1,128)}', space=vmem, size = 0x12000, scoped, tag = 'internal scratch']
  %s0 = inlined_call_operand.vmem [shape: f32[64,32], index: 0, kind: input, shape index: {}]
  %s1 = inlined_call_operand.vmem [shape: f32[64,32], index: 1, kind: output, shape index: {}]
  %s2 = sld [smem:[#allocation0]]
  $region14: #{tpu_custom_call.1} parent=0
    _
  %s4 = ssub.s32 1, %s2
  %s5 = scalar_select 0, %s4, %s2
  // Predicated region
  $region2: #{tpu_custom_call.1} parent=0 // pred_check
    _
  $region3: #{tpu_custom_call.1} parent=0 // pred_check_branch
    %7 = sbr.rel (0) target = $region5
  $region4: #{tpu_custom_call.1} parent=0 // pred_region
    _
  $region5: #{tpu_custom_call.1} parent=0 // pred_fallthru
    _
  %v8 = vld [vmem:[%s0] sm:$0xff]
  %v9 = vld [vmem:[%s0 + $0x8] sm:$0xff]
  %v10 = vld [vmem:[%s0 + $0x10] sm:$0xff]
  %v11 = vld [vmem:[%s0 + $0x18] sm:$0xff]
  %v12 = vld [vmem:[%s0 + $0x20] sm:$0xff]
  %v13 = vld [vmem:[%s0 + $0x28] sm:$0xff]
  %v14 = vld [vmem:[%s0 + $0x30] sm:$0xff]
  %v15 = vld [vmem:[%s0 + $0x38] sm:$0xff]
  %vm16 = vcmask 261120
  %v17 = vsel %vm16, %v8, 0.0
  %v18 = vsel %vm16, %v9, 0.0
  %v19 = vadd.f32 %v17, %v18
  %v20 = vsel %vm16, %v10, 0.0
  %v21 = vadd.f32 %v19, %v20
  %v22 = vsel %vm16, %v11, 0.0
  %v23 = vadd.f32 %v21, %v22
  %v24 = vsel %vm16, %v12, 0.0
  %v25 = vadd.f32 %v23, %v24
  %v26 = vsel %vm16, %v13, 0.0
  %v27 = vadd.f32 %v25, %v26
  %v28 = vsel %vm16, %v14, 0.0
  %v29 = vadd.f32 %v27, %v28
  %v30 = vsel %vm16, %v15, 0.0
  %v31 = vadd.f32 %v29, %v30
  %v32 = vrot.slane %v31, 4
  %v33 = vadd.f32 %v31, %v32
  %v34 = vrot.slane %v33, 2
  %v35 = vadd.f32 %v33, %v34
  %v36 = vrot.slane %v35, 1
  %v37 = vadd.f32 %v35, %v36
  %v38 = vrcp.pop 64.0
  %v39 = vmul.f32 %v37, %v38
  %v40 = vsub.f32 %v8, %v39
  %v41 = vsub.f32 %v9, %v39
  %v42 = vsub.f32 %v10, %v39
  %v43 = vsub.f32 %v11, %v39
  %v44 = vsub.f32 %v12, %v39
  %v45 = vsub.f32 %v13, %v39
  %v46 = vsub.f32 %v14, %v39
  %v47 = vsub.f32 %v15, %v39
  %v48 = vmul.f32 %v40, %v40
  %v49 = vmul.f32 %v41, %v41
  %v50 = vmul.f32 %v42, %v42
  %v51 = vmul.f32 %v43, %v43
  %v52 = vmul.f32 %v44, %v44
  %v53 = vmul.f32 %v45, %v45
  %v54 = vmul.f32 %v46, %v46
  %v55 = vmul.f32 %v47, %v47
  %v56 = vsel %vm16, %v48, 0.0
  %v57 = vsel %vm16, %v49, 0.0
  %v58 = vadd.f32 %v56, %v57
  %v59 = vsel %vm16, %v50, 0.0
  %v60 = vadd.f32 %v58, %v59
  %v61 = vsel %vm16, %v51, 0.0
  %v62 = vadd.f32 %v60, %v61
  %v63 = vsel %vm16, %v52, 0.0
  %v64 = vadd.f32 %v62, %v63
  %v65 = vsel %vm16, %v53, 0.0
  %v66 = vadd.f32 %v64, %v65
  %v67 = vsel %vm16, %v54, 0.0
  %v68 = vadd.f32 %v66, %v67
  %v69 = vsel %vm16, %v55, 0.0
  %v70 = vadd.f32 %v68, %v69
  %71 = vadd.xlane.f32.xlu0 %v70
  %v72 = vpop.xlane.xlu0 %71
  %v73 = vrot.slane %v72, 4
  %v74 = vadd.f32 %v72, %v73
  %v75 = vrot.slane %v74, 2
  %v76 = vadd.f32 %v74, %v75
  %v77 = vrot.slane %v76, 1
  %v78 = vadd.f32 %v76, %v77
  %s79 = vtos %v78
  %s80 = smul.f32 %s79, 0.015625
  %s81 = sadd.f32 %s80, 1e-06
  %v82 = vstv %s81
  %v83 = vrsqrt.pop %v82
  %s84 = vtos %v83
  %v85 = vstv %s84
  %v86 = vmul.f32 %v40, %v85
  %v87 = vmul.f32 %v41, %v85
  %v88 = vmul.f32 %v42, %v85
  %v89 = vmul.f32 %v43, %v85
  %v90 = vmul.f32 %v44, %v85
  %v91 = vmul.f32 %v45, %v85
  %v92 = vmul.f32 %v46, %v85
  %v93 = vmul.f32 %v47, %v85
  %94 = vst.msk [vmem:[%s1] sm:$0xff] %vm16, %v86
  %95 = vst.msk [vmem:[%s1 + $0x8] sm:$0xff] %vm16, %v87
  %96 = vst.msk [vmem:[%s1 + $0x10] sm:$0xff] %vm16, %v88
  %97 = vst.msk [vmem:[%s1 + $0x18] sm:$0xff] %vm16, %v89
  %98 = vst.msk [vmem:[%s1 + $0x20] sm:$0xff] %vm16, %v90
  %99 = vst.msk [vmem:[%s1 + $0x28] sm:$0xff] %vm16, %v91
  %100 = vst.msk [vmem:[%s1 + $0x30] sm:$0xff] %vm16, %v92
  %101 = vst.msk [vmem:[%s1 + $0x38] sm:$0xff] %vm16, %v93
  // Predicated region
  $region6: #{tpu_custom_call.1} parent=0 // pred_check
    _
  $region7: #{tpu_custom_call.1} parent=0 // pred_check_branch
    %103 = sbr.rel (0) target = $region9
  $region8: #{tpu_custom_call.1} parent=0 // pred_region
    _
  $region9: #{tpu_custom_call.1} parent=0 // pred_fallthru
    _
  // Predicated region
  $region10: #{tpu_custom_call.1} parent=0 // pred_check
    _
  $region11: #{tpu_custom_call.1} parent=0 // pred_check_branch
    %105 = sbr.rel (0) target = $region13
  $region12: #{tpu_custom_call.1} parent=0 // pred_region
    _
  $region13: #{tpu_custom_call.1} parent=0 // pred_fallthru
    _

</llo_original>
